<compile_context>
chip_gen: v6e
topology: v6e:2x2x1
jax: 0.10.0
libtpu: 0.0.40
codegen_flags: <defaults>
</compile_context>

<pallas_src>
import jax
import jax.numpy as jnp
from jax import lax
from jax.experimental import pallas as pl
from jax.experimental.pallas import tpu as pltpu

LANES = 128
SUBLANES = 8
TARGET_BLOCK_BYTES = 1 << 20  # ~1 MiB per input block per pipeline buffer


def _round_up(x: int, m: int) -> int:
    return ((x + m - 1) // m) * m


def _make_ccc_kernel(n_elems: int, tile_r: int, tiles_per_core: int, need_mask: bool):
    def ccc_kernel(shift_ref, yt_ref, yh_ref, out_ref):
        i = pl.program_id(1)

        @pl.when(i == 0)
        def _init():
            out_ref[...] = jnp.zeros_like(out_ref)

        # Stream in original dtype; cast + shift in-register (shift-invariant moments).
        yt = yt_ref[...].astype(jnp.float32) - shift_ref[0]
        yh = yh_ref[...].astype(jnp.float32) - shift_ref[1]

        if need_mask:
            # Element-granularity mask: zeroes partial-block garbage, OOB (clamped)
            # duplicate blocks and the sub-128 lane remainder.  int32 indices are fine
            # for n < 2**31 elements.
            c = pl.program_id(0)
            row_start = (c * tiles_per_core + i) * tile_r
            row_ids = lax.broadcasted_iota(jnp.int32, (tile_r, LANES), 0)
            lane_ids = lax.broadcasted_iota(jnp.int32, (tile_r, LANES), 1)
            gidx = (row_start + row_ids) * LANES + lane_ids
            valid = gidx < n_elems
            yt = jnp.where(valid, yt, 0.0)
            yh = jnp.where(valid, yh, 0.0)

        # (tile_r, 128) -> (tile_r//8, 8, 128): summing axis=0 is a chain of whole-vreg
        # VPU adds (no cross-lane XLU work in the hot loop).
        yt3 = yt.reshape(tile_r // SUBLANES, SUBLANES, LANES)
        yh3 = yh.reshape(tile_r // SUBLANES, SUBLANES, LANES)

        partial = jnp.stack([
            jnp.sum(yt3, axis=0),
            jnp.sum(yh3, axis=0),
            jnp.sum(yt3 * yt3, axis=0),
            jnp.sum(yh3 * yh3, axis=0),
            jnp.sum(yt3 * yh3, axis=0),
        ])                                  # (5, 8, 128)
        out_ref[0] += partial               # output block is the resident accumulator

    return ccc_kernel


def _ccc_from_moments(m, shifts, n_elems, eps, mean_diff):
    """Combine shifted raw moments into the CCC loss (plain JAX, a handful of scalars)."""
    n = jnp.float32(n_elems)
    s_x, s_y, s_xx, s_yy, s_xy = m[0], m[1], m[2], m[3], m[4]
    mean_xs = s_x / n                      # mean of (x - shift_x)
    mean_ys = s_y / n
    # Centered second moments (shift-invariant); clamp tiny negative rounding residue.
    sum_vx2 = jnp.maximum(s_xx - s_x * mean_xs, 0.0)
    sum_vy2 = jnp.maximum(s_yy - s_y * mean_ys, 0.0)
    sum_vxy = s_xy - s_x * mean_ys
    # torch.var / torch.std are unbiased (divide by N-1).
    var_x = sum_vx2 / (n - 1.0)
    var_y = sum_vy2 / (n - 1.0)
    std_x = jnp.sqrt(var_x)
    std_y = jnp.sqrt(var_y)
    if mean_diff:
        mean_delta = (mean_ys + shifts[1]) - (mean_xs + shifts[0])   # mean_y - mean_x
        denom = var_x + var_y + mean_delta ** 2
    else:
        denom = var_x + var_y
    pcc = sum_vxy / (jnp.sqrt(sum_vx2 + eps) * jnp.sqrt(sum_vy2 + eps))
    ccc = 2.0 * pcc * std_x * std_y / denom
    return 1.0 - ccc


def ccc_loss(y_true, y_hat, *, eps: float = 1e-6, mean_diff: bool = True,
             block_bytes: int = TARGET_BLOCK_BYTES):
    """Pallas implementation of CCCLoss.forward. Returns a scalar float32."""
    assert y_true.shape == y_hat.shape, "y_true and y_hat must have same shape"
    n_elems = int(y_true.size)
    assert n_elems >= 2, "need at least 2 elements for an unbiased variance"

    yt = jnp.ravel(y_true)
    yh = jnp.ravel(y_hat)

    # Cheap per-tensor shift (first element) for numerically robust one-pass moments.
    shifts = jnp.stack([yt[0].astype(jnp.float32), yh[0].astype(jnp.float32)])

    # Dtype-aware tiling: constant DMA bytes per step, sublane packing respected.
    itemsize = max(jnp.dtype(y_true.dtype).itemsize, jnp.dtype(y_hat.dtype).itemsize)
    pack = max(SUBLANES, 32 // min(itemsize, 4))        # 8 f32 / 16 bf16 / 32 int8-fp8
    target_rows = max(pack, (block_bytes // (LANES * itemsize)) // pack * pack)

    rows = pl.cdiv(n_elems, LANES)                      # rows of the (rows, 128) view
    tile_r = min(target_rows, _round_up(rows, pack))

    num_blocks = pl.cdiv(rows, tile_r)
    ncores = 2 if num_blocks >= 2 else 1                # v7x: split the scan across TCs
    tiles_per_core = pl.cdiv(num_blocks, ncores)
    coverage = ncores * tiles_per_core * tile_r * LANES
    need_mask = coverage != n_elems

    padded = rows * LANES
    if padded != n_elems:
        # Only the sub-128 remainder forces this copy (required for the reshape); the
        # padded values are irrelevant because the kernel masks by element index.
        yt = jnp.pad(yt, (0, padded - n_elems))
        yh = jnp.pad(yh, (0, padded - n_elems))
    yt2d = yt.reshape(rows, LANES)
    yh2d = yh.reshape(rows, LANES)

    if ncores * tiles_per_core > num_blocks:
        # Odd split: clamp the block index so the DMA start stays in bounds; the
        # duplicate block's contribution is zeroed by the in-kernel mask.
        def blk_idx(c, i):
            return (jnp.minimum(c * tiles_per_core + i, num_blocks - 1), 0)
    else:
        def blk_idx(c, i):
            return (c * tiles_per_core + i, 0)

    kernel = _make_ccc_kernel(n_elems, tile_r, tiles_per_core, need_mask)

    parts = pl.pallas_call(
        kernel,
        out_shape=jax.ShapeDtypeStruct((ncores, 5, SUBLANES, LANES), jnp.float32),
        grid_spec=pltpu.PrefetchScalarGridSpec(
            num_scalar_prefetch=0,
            grid=(ncores, tiles_per_core),
            in_specs=[
                pl.BlockSpec(memory_space=pltpu.MemorySpace.SMEM),   # shifts (2,)
                pl.BlockSpec((tile_r, LANES), blk_idx),
                pl.BlockSpec((tile_r, LANES), blk_idx),
            ],
            out_specs=pl.BlockSpec((1, 5, SUBLANES, LANES),
                                   lambda c, i: (c, 0, 0, 0)),
        ),
        compiler_params=pltpu.CompilerParams(
            dimension_semantics=("parallel", "arbitrary"),
            vmem_limit_bytes=32 * 1024 * 1024,
        ),
    )(shifts, yt2d, yh2d)

    # Tiny combine (per-core partials + vreg accumulators) + CCC epilogue outside.
    moments = jnp.sum(parts, axis=(0, 2, 3))            # (5,)
    return _ccc_from_moments(moments, shifts, n_elems, eps, mean_diff)


def ccc_loss_ref(y_true, y_hat, *, eps: float = 1e-6, mean_diff: bool = True):
    """Pure-JAX reference mirroring the PyTorch forward exactly."""
    y_true = y_true.astype(jnp.float32).ravel()
    y_hat = y_hat.astype(jnp.float32).ravel()
    y_true_mean = jnp.mean(y_true)
    y_hat_mean = jnp.mean(y_hat)
    y_true_var = jnp.var(y_true, ddof=1)
    y_hat_var = jnp.var(y_hat, ddof=1)
    y_true_std = jnp.std(y_true, ddof=1)
    y_hat_std = jnp.std(y_hat, ddof=1)
    vx = y_true - y_true_mean
    vy = y_hat - y_hat_mean
    if mean_diff:
        denom = y_true_var + y_hat_var + (y_hat_mean - y_true_mean) ** 2
    else:
        denom = y_true_var + y_hat_var
    pcc = jnp.sum(vx * vy) / (
        jnp.sqrt(jnp.sum(vx ** 2) + eps) * jnp.sqrt(jnp.sum(vy ** 2) + eps)
    )
    ccc = 2 * pcc * y_true_std * y_hat_std / denom
    return 1 - ccc


if __name__ == "__main__":
    key = jax.random.PRNGKey(0)
    k1, k2 = jax.random.split(key)

    # 1) Small regression-style input (NCHW-ish): lane-aligned, single block, 1 core.
    shape = (2, 4, 16, 16)
    y_true = jax.random.normal(k1, shape, dtype=jnp.float32)
    y_hat = 0.7 * y_true + 0.3 * jax.random.normal(k2, shape, dtype=jnp.float32)
    loss = jax.block_until_ready(ccc_loss(y_true, y_hat))
    ref = jax.block_until_ready(ccc_loss_ref(y_true, y_hat))
    assert jnp.allclose(loss, ref, rtol=1e-4, atol=1e-5), (loss, ref)

    # 2) Ragged size (n % 128 != 0) with a mean offset -> element-mask + shift path.
    n_odd = 1000
    yt_odd = jax.random.normal(k1, (n_odd,), dtype=jnp.float32) + 3.0
    yh_odd = 0.5 * yt_odd + 0.5 * jax.random.normal(k2, (n_odd,), dtype=jnp.float32)
    loss_odd = jax.block_until_ready(ccc_loss(yt_odd, yh_odd))
    ref_odd = jax.block_until_ready(ccc_loss_ref(yt_odd, yh_odd))
    assert jnp.allclose(loss_odd, ref_odd, rtol=1e-4, atol=1e-5), (loss_odd, ref_odd)

    # 3) Multi-block, even 2-core split, no mask (small block_bytes to exercise it here).
    shape3 = (4, 8, 32, 32)  # 32768 elements
    y3t = jax.random.normal(k1, shape3, dtype=jnp.float32)
    y3h = 0.6 * y3t + 0.4 * jax.random.normal(k2, shape3, dtype=jnp.float32)
    l3 = jax.block_until_ready(ccc_loss(y3t, y3h, block_bytes=4096))
    r3 = jax.block_until_ready(ccc_loss_ref(y3t, y3h))
    assert jnp.allclose(l3, r3, rtol=1e-4, atol=1e-5), (l3, r3)

    # 4) Odd block count + ragged -> clamped block index + mask on the 2-core grid.
    n4 = 5000
    y4t = jax.random.normal(k1, (n4,), dtype=jnp.float32) * 2.0 + 1.5
    y4h = 0.8 * y4t + 0.2 * jax.random.normal(k2, (n4,), dtype=jnp.float32)
    l4 = jax.block_until_ready(ccc_loss(y4t, y4h, block_bytes=4096))
    r4 = jax.block_until_ready(ccc_loss_ref(y4t, y4h))
    assert jnp.allclose(l4, r4, rtol=1e-4, atol=1e-5), (l4, r4)

    # 5) bf16 inputs stream in bf16 on the wire (16-row sublane packing).
    y5t = y_true.astype(jnp.bfloat16)
    y5h = y_hat.astype(jnp.bfloat16)
    l5 = jax.block_until_ready(ccc_loss(y5t, y5h))
    r5 = jax.block_until_ready(ccc_loss_ref(y5t, y5h))
    assert jnp.allclose(l5, r5, rtol=1e-3, atol=1e-3), (l5, r5)

    print("KERNEL_OK")
</pallas_src>

<mosaic_0001>
module attributes {stable_mosaic.version = 11 : i64} {
  func.func @ccc_kernel(%arg0: i32, %arg1: i32, %arg2: memref<2xf32, #tpu.memory_space<smem>>, %arg3: memref<16x128xf32, #tpu.memory_space<vmem>>, %arg4: memref<16x128xf32, #tpu.memory_space<vmem>>, %arg5: memref<1x5x8x128xf32, #tpu.memory_space<vmem>>) attributes {dimension_semantics = [#tpu.dimension_semantics<parallel>, #tpu.dimension_semantics<arbitrary>], iteration_bounds = array<i64: 1, 1>, scalar_prefetch = 0 : i64, scratch_operands = 0 : i64, tpu.core_type = #tpu.core_type<tc>, window_params = [{transform_indices = @transform_0, window_bounds = array<i64: 2>}, {transform_indices = @transform_1, window_bounds = array<i64: 16, 128>}, {transform_indices = @transform_2, window_bounds = array<i64: 16, 128>}, {transform_indices = @transform_3, window_bounds = array<i64: 1, 5, 8, 128>}]} {
    %c0_i32 = arith.constant 0 : i32
    %0 = arith.cmpi eq, %arg1, %c0_i32 : i32
    %1 = arith.extui %0 : i1 to i32
    %c0_i32_0 = arith.constant 0 : i32
    %2 = arith.cmpi ne, %1, %c0_i32_0 : i32
    scf.if %2 {
      %cst_17 = arith.constant 0.000000e+00 : f32
      %33 = vector.broadcast %cst_17 : f32 to vector<1x5x8x128xf32>
      %c0_18 = arith.constant 0 : index
      %c0_19 = arith.constant 0 : index
      %c0_20 = arith.constant 0 : index
      %c0_21 = arith.constant 0 : index
      %34 = vector.load %arg5[%c0_18, %c0_19, %c0_20, %c0_21] : memref<1x5x8x128xf32, #tpu.memory_space<vmem>>, vector<1x5x8x128xf32>
      tpu.vector_store %arg5[%c0_18, %c0_19, %c0_20, %c0_21], %33 {strides = array<i32>} : memref<1x5x8x128xf32, #tpu.memory_space<vmem>>, vector<1x5x8x128xf32>,
    } else {
    }
    %c0 = arith.constant 0 : index
    %c0_1 = arith.constant 0 : index
    %3 = vector.load %arg3[%c0, %c0_1] : memref<16x128xf32, #tpu.memory_space<vmem>>, vector<16x128xf32>
    %c0_2 = arith.constant 0 : index
    %4 = memref.load %arg2[%c0_2] : memref<2xf32, #tpu.memory_space<smem>>
    %5 = vector.broadcast %4 : f32 to vector<16x128xf32>
    %6 = arith.subf %3, %5 : vector<16x128xf32>
    %c0_3 = arith.constant 0 : index
    %c0_4 = arith.constant 0 : index
    %7 = vector.load %arg4[%c0_3, %c0_4] : memref<16x128xf32, #tpu.memory_space<vmem>>, vector<16x128xf32>
    %c1 = arith.constant 1 : index
    %8 = memref.load %arg2[%c1] : memref<2xf32, #tpu.memory_space<smem>>
    %9 = vector.broadcast %8 : f32 to vector<16x128xf32>
    %10 = arith.subf %7, %9 : vector<16x128xf32>
    %11 = vector.shape_cast %6 : vector<16x128xf32> to vector<2x8x128xf32>
    %12 = vector.shape_cast %10 : vector<16x128xf32> to vector<2x8x128xf32>
    %cst = arith.constant dense<0.000000e+00> : vector<8x128xf32>
    %13 = vector.multi_reduction <add>, %11, %cst [0] : vector<2x8x128xf32> to vector<8x128xf32>
    %cst_5 = arith.constant dense<0.000000e+00> : vector<8x128xf32>
    %14 = vector.multi_reduction <add>, %12, %cst_5 [0] : vector<2x8x128xf32> to vector<8x128xf32>
    %15 = arith.mulf %11, %11 : vector<2x8x128xf32>
    %cst_6 = arith.constant dense<0.000000e+00> : vector<8x128xf32>
    %16 = vector.multi_reduction <add>, %15, %cst_6 [0] : vector<2x8x128xf32> to vector<8x128xf32>
    %17 = arith.mulf %12, %12 : vector<2x8x128xf32>
    %cst_7 = arith.constant dense<0.000000e+00> : vector<8x128xf32>
    %18 = vector.multi_reduction <add>, %17, %cst_7 [0] : vector<2x8x128xf32> to vector<8x128xf32>
    %19 = arith.mulf %11, %12 : vector<2x8x128xf32>
    %cst_8 = arith.constant dense<0.000000e+00> : vector<8x128xf32>
    %20 = vector.multi_reduction <add>, %19, %cst_8 [0] : vector<2x8x128xf32> to vector<8x128xf32>
    %21 = vector.shape_cast %13 : vector<8x128xf32> to vector<1x8x128xf32>
    %22 = vector.shape_cast %14 : vector<8x128xf32> to vector<1x8x128xf32>
    %23 = vector.shape_cast %16 : vector<8x128xf32> to vector<1x8x128xf32>
    %24 = vector.shape_cast %18 : vector<8x128xf32> to vector<1x8x128xf32>
    %25 = vector.shape_cast %20 : vector<8x128xf32> to vector<1x8x128xf32>
    %26 = tpu.concatenate %21, %22, %23, %24, %25 in 0 : vector<1x8x128xf32>, vector<1x8x128xf32>, vector<1x8x128xf32>, vector<1x8x128xf32>, vector<1x8x128xf32> -> vector<5x8x128xf32>
    %c0_9 = arith.constant 0 : index
    %c0_10 = arith.constant 0 : index
    %c0_11 = arith.constant 0 : index
    %c0_12 = arith.constant 0 : index
    %27 = vector.load %arg5[%c0_9, %c0_10, %c0_11, %c0_12] : memref<1x5x8x128xf32, #tpu.memory_space<vmem>>, vector<1x5x8x128xf32>
    %28 = vector.shape_cast %27 : vector<1x5x8x128xf32> to vector<5x8x128xf32>
    %29 = arith.addf %28, %26 : vector<5x8x128xf32>
    %c0_13 = arith.constant 0 : index
    %c0_14 = arith.constant 0 : index
    %c0_15 = arith.constant 0 : index
    %c0_16 = arith.constant 0 : index
    %30 = vector.load %arg5[%c0_13, %c0_14, %c0_15, %c0_16] : memref<1x5x8x128xf32, #tpu.memory_space<vmem>>, vector<1x5x8x128xf32>
    %31 = vector.shape_cast %30 : vector<1x5x8x128xf32> to vector<5x8x128xf32>
    %32 = vector.shape_cast %29 : vector<5x8x128xf32> to vector<1x5x8x128xf32>
    tpu.vector_store %arg5[%c0_13, %c0_14, %c0_15, %c0_16], %32 {strides = array<i32>} : memref<1x5x8x128xf32, #tpu.memory_space<vmem>>, vector<1x5x8x128xf32>,
    return
  }
  func.func @transform_0(%arg0: i32, %arg1: i32) -> i32 {
    %c0_i32 = arith.constant 0 : i32
    %c0_i32_0 = arith.constant 0 : i32
    return %c0_i32 : i32
  }
  func.func @transform_1(%arg0: i32, %arg1: i32) -> (i32, i32) {
    %c1_i32 = arith.constant 1 : i32
    %0 = arith.muli %arg0, %c1_i32 : i32
    %1 = arith.addi %0, %arg1 : i32
    %c0_i32 = arith.constant 0 : i32
    %c0_i32_0 = arith.constant 0 : i32
    return %1, %c0_i32 : i32, i32
  }
  func.func @transform_2(%arg0: i32, %arg1: i32) -> (i32, i32) {
    %c1_i32 = arith.constant 1 : i32
    %0 = arith.muli %arg0, %c1_i32 : i32
    %1 = arith.addi %0, %arg1 : i32
    %c0_i32 = arith.constant 0 : i32
    %c0_i32_0 = arith.constant 0 : i32
    return %1, %c0_i32 : i32, i32
  }
  func.func @transform_3(%arg0: i32, %arg1: i32) -> (i32, i32, i32, i32) {
    %c0_i32 = arith.constant 0 : i32
    %c0_i32_0 = arith.constant 0 : i32
    %c0_i32_1 = arith.constant 0 : i32
    %c0_i32_2 = arith.constant 0 : i32
    return %arg0, %c0_i32, %c0_i32_0, %c0_i32_1 : i32, i32, i32, i32
  }
}

</mosaic_0001>

<llo_original>
// kernel: tpu_custom_call.1
$region0: #{tpu_custom_call.1}
  #allocation0 [shape = 'u32[]', space=smem, size = 0x4, offset = 0x4, fixed_abs, tag = 'smem constant byte address 0x4 - core index']
  #allocation1 [shape = 'u32[144,128]{1,0:T(1,128)}', space=vmem, size = 0x12000, scoped, tag = 'internal scratch']
  %s0 = inlined_call_operand.hbm [shape: f32[2], index: 0, kind: input, shape index: {}]
  %s1 = inlined_call_operand.hbm [shape: f32[16,128], index: 1, kind: input, shape index: {}]
  %s2 = inlined_call_operand.hbm [shape: f32[16,128], index: 2, kind: input, shape index: {}]
  %s3 = inlined_call_operand.hbm [shape: f32[1,5,8,128], index: 3, kind: output, shape index: {}]
  %s4 = sld [smem:[#allocation0]]
  $region38: #{tpu_custom_call.1} parent=0
    _
  %s6 = ssub.s32 1, %s4
  %s7 = scalar_select 0, %s6, %s4
  $region1: #{tpu_custom_call.1} parent=0
    #allocation2 [shape = 'u8[512]{0}', space=smem, size = 0x200, scoped, tag = 'input window, operand 0, single buffered']
    #allocation3 [shape = 's32[1]{0}', space=sflag, size = 0x4, scoped, tag = 'scoped memory for tpu_custom_call.1']
    #allocation4 [shape = 's32[1]{0}', space=sflag, size = 0x4, scoped, tag = 'scoped memory for tpu_custom_call.1']
    #allocation5 [shape = 's32[1]{0}', space=sflag, size = 0x4, scoped, tag = 'scoped memory for tpu_custom_call.1']
    #allocation6 [shape = 'u8[8192]{0}', space=vmem, size = 0x2000, scoped, tag = 'input window, operand 1, single buffered']
    #allocation7 [shape = 'u8[8192]{0}', space=vmem, size = 0x2000, scoped, tag = 'input window, operand 2, single buffered']
    #allocation8 [shape = 's32[1]{0}', space=sflag, size = 0x4, scoped, tag = 'scoped memory for tpu_custom_call.1']
    #allocation9 [shape = 'u8[20480]{0}', space=vmem, size = 0x5000, scoped, tag = 'output window, operand 0, single buffered']
    %8 = vsyncpa [#allocation5], 0
    %9 = vsyncpa [#allocation3], 0
    %10 = vsyncpa [#allocation8], 0
    %11 = vsyncpa [#allocation4], 0
    // Predicated region
    $region2: #{tpu_custom_call.1} parent=1 // pred_check
      _
    $region3: #{tpu_custom_call.1} parent=1 // pred_check_branch
      %13 = sbr.rel (0) target = $region5
    $region4: #{tpu_custom_call.1} parent=1 // pred_region
      %s15 = ssub.s32 16, 16
      %16 = vsyncadd [#allocation5], %s15
      %19 = dma.hbm_to_smem %s0, 16, [#allocation2], [#allocation5]
    $region5: #{tpu_custom_call.1} parent=1 // pred_fallthru
      _
    // Predicated region
    $region6: #{tpu_custom_call.1} parent=1 // pred_check
      _
    $region7: #{tpu_custom_call.1} parent=1 // pred_check_branch
      %21 = sbr.rel (0) target = $region9
    $region8: #{tpu_custom_call.1} parent=1 // pred_region
      %s22 = sadd.s32 0, 0
      %s23 = smul.u32 2, %s22
      %s25 = ssub.s32 256, 256
      %26 = vsyncadd [#allocation3], %s25
      %s27 = smul.addr %s23, 128
      %s28 = scalar_lea.hbm %s1, %s27
      %s29 = sshll.u32 [#allocation6], 4
      %s30 = int_to_ptr.vmem [resolvable:$true] %s29
      %35 = dma.hbm_to_vmem [thread:$0]  %s28, 256, %s30, [#allocation3], 128, 128, 8
    $region9: #{tpu_custom_call.1} parent=1 // pred_fallthru
      _
    // Predicated region
    $region10: #{tpu_custom_call.1} parent=1 // pred_check
      _
    $region11: #{tpu_custom_call.1} parent=1 // pred_check_branch
      %37 = sbr.rel (0) target = $region13
    $region12: #{tpu_custom_call.1} parent=1 // pred_region
      %s38 = sadd.s32 0, 0
      %s39 = smul.u32 2, %s38
      %s41 = ssub.s32 256, 256
      %42 = vsyncadd [#allocation8], %s41
      %s43 = smul.addr %s39, 128
      %s44 = scalar_lea.hbm %s2, %s43
      %s45 = sshll.u32 [#allocation7], 4
      %s46 = int_to_ptr.vmem [resolvable:$true] %s45
      %51 = dma.hbm_to_vmem [thread:$0]  %s44, 256, %s46, [#allocation8], 128, 128, 8
    $region13: #{tpu_custom_call.1} parent=1 // pred_fallthru
      _
    // Predicated region
    $region14: #{tpu_custom_call.1} parent=1 // pred_check
      _
    $region15: #{tpu_custom_call.1} parent=1 // pred_check_branch
      %53 = sbr.rel (0) target = $region17
    $region16: #{tpu_custom_call.1} parent=1 // pred_region
      %54 = dma.done [#allocation5], 16
    $region17: #{tpu_custom_call.1} parent=1 // pred_fallthru
      _
    // Predicated region
    $region18: #{tpu_custom_call.1} parent=1 // pred_check
      _
    $region19: #{tpu_custom_call.1} parent=1 // pred_check_branch
      %56 = sbr.rel (0) target = $region21
    $region20: #{tpu_custom_call.1} parent=1 // pred_region
      %57 = dma.done [#allocation3], 256
    $region21: #{tpu_custom_call.1} parent=1 // pred_fallthru
      _
    // Predicated region
    $region22: #{tpu_custom_call.1} parent=1 // pred_check
      _
    $region23: #{tpu_custom_call.1} parent=1 // pred_check_branch
      %59 = sbr.rel (0) target = $region25
    $region24: #{tpu_custom_call.1} parent=1 // pred_region
      %60 = dma.done [#allocation8], 256
    $region25: #{tpu_custom_call.1} parent=1 // pred_fallthru
      _
    %61 = sfence
    %s62 = sadd.s32 0, 0
    %s63 = smul.u32 2, %s62
    %s64 = sadd.s32 0, 0
    %s65 = smul.u32 2, %s64
    %p66 = scmp.eq.s32.totalorder 0, 0
    // Predicated region
    $region26: #{tpu_custom_call.1} parent=1 // pred_check
      %p67 = pneg %p66
    $region27: #{tpu_custom_call.1} parent=1 // pred_check_branch
      %69 = sbr.rel (%p67) target = $region29
    $region28: #{tpu_custom_call.1} parent=1 // pred_region
      %70 = vst [vmem:[#allocation9] sm:$0xff] 0.0
      %71 = vst [vmem:[#allocation9 + $0x8] sm:$0xff] 0.0
      %72 = vst [vmem:[#allocation9 + $0x10] sm:$0xff] 0.0
      %73 = vst [vmem:[#allocation9 + $0x18] sm:$0xff] 0.0
      %74 = vst [vmem:[#allocation9 + $0x20] sm:$0xff] 0.0
    $region29: #{tpu_custom_call.1} parent=1 // pred_fallthru
      _
    %v75 = vld [vmem:[#allocation6] sm:$0xff]
    %v76 = vld [vmem:[#allocation6 + $0x8] sm:$0xff]
    %s77 = sld [smem:[#allocation2]]
    %v78 = vstv %s77
    %v79 = vsub.f32 %v75, %v78
    %v80 = vsub.f32 %v76, %v78
    %v81 = vld [vmem:[#allocation7] sm:$0xff]
    %v82 = vld [vmem:[#allocation7 + $0x8] sm:$0xff]
    %s83 = sld [smem:[#allocation2 + $0x1]]
    %v84 = vstv %s83
    %v85 = vsub.f32 %v81, %v84
    %v86 = vsub.f32 %v82, %v84
    %v87 = vadd.f32 %v79, %v80
    %v88 = vadd.f32 %v85, %v86
    %v89 = vmul.f32 %v79, %v79
    %v90 = vmul.f32 %v80, %v80
    %v91 = vadd.f32 %v89, %v90
    %v92 = vmul.f32 %v85, %v85
    %v93 = vmul.f32 %v86, %v86
    %v94 = vadd.f32 %v92, %v93
    %v95 = vmul.f32 %v79, %v85
    %v96 = vmul.f32 %v80, %v86
    %v97 = vadd.f32 %v95, %v96
    %v98 = vld [vmem:[#allocation9] sm:$0xff]
    %v99 = vld [vmem:[#allocation9 + $0x8] sm:$0xff]
    %v100 = vld [vmem:[#allocation9 + $0x10] sm:$0xff]
    %v101 = vld [vmem:[#allocation9 + $0x18] sm:$0xff]
    %v102 = vld [vmem:[#allocation9 + $0x20] sm:$0xff]
    %v103 = vadd.f32 %v98, %v87
    %v104 = vadd.f32 %v99, %v88
    %v105 = vadd.f32 %v100, %v91
    %v106 = vadd.f32 %v101, %v94
    %v107 = vadd.f32 %v102, %v97
    %108 = vst [vmem:[#allocation9] sm:$0xff] %v103
    %109 = vst [vmem:[#allocation9 + $0x8] sm:$0xff] %v104
    %110 = vst [vmem:[#allocation9 + $0x10] sm:$0xff] %v105
    %111 = vst [vmem:[#allocation9 + $0x18] sm:$0xff] %v106
    %112 = vst [vmem:[#allocation9 + $0x20] sm:$0xff] %v107
    // Predicated region
    $region30: #{tpu_custom_call.1} parent=1 // pred_check
      _
    $region31: #{tpu_custom_call.1} parent=1 // pred_check_branch
      %114 = sbr.rel (0) target = $region33
    $region32: #{tpu_custom_call.1} parent=1 // pred_region
      %s116 = ssub.s32 640, 640
      %117 = vsyncadd [#allocation4], %s116
      %s118 = sshll.u32 [#allocation9], 4
      %s119 = int_to_ptr.vmem [resolvable:$true] %s118
      %124 = dma.vmem_to_hbm [thread:$0]  %s119, 640, %s3, [#allocation4], 128, 128, 8
    $region33: #{tpu_custom_call.1} parent=1 // pred_fallthru
      _
    // Predicated region
    $region34: #{tpu_custom_call.1} parent=1 // pred_check
      _
    $region35: #{tpu_custom_call.1} parent=1 // pred_check_branch
      %126 = sbr.rel (0) target = $region37
    $region36: #{tpu_custom_call.1} parent=1 // pred_region
      %127 = dma.done [#allocation4], 640
    $region37: #{tpu_custom_call.1} parent=1 // pred_fallthru
      _
    %128 = vsyncpa [#allocation3], 1
    %129 = vsyncpa [#allocation8], 1
    %130 = vsyncpa [#allocation4], 1
    %131 = vsyncpa [#allocation5], 1

</llo_original>
